<compile_context>
chip_gen: v6e
topology: v6e:2x2x1
jax: 0.10.0
libtpu: 0.0.40
codegen_flags: <defaults>
</compile_context>

<pallas_src>
import math

import jax
import jax.numpy as jnp
from jax.experimental import pallas as pl
from jax.experimental.pallas import tpu as pltpu

NEG_SLOPE = 0.01   # PyTorch nn.LeakyReLU default
LANE = 128
SUBLANE = 8


def _round_up(x, m):
    return ((x + m - 1) // m) * m


def _cdiv(a, b):
    return (a + b - 1) // b


def _leaky_relu(x):
    # slope < 1  =>  leaky_relu(x) == max(x, slope * x)   (mul + max on the VPU)
    return jnp.maximum(x, NEG_SLOPE * x)


def _tile_batch(B, align, max_tile):
    """Pick (TB, Bp): TB multiple of `align`, Bp = TB * steps.

    Prefer >=2 grid steps (pipelining / megacore) while keeping padding waste
    bounded by one alignment group above round_up(B, align)."""
    B_r = _round_up(max(B, 1), align)
    steps = max(_cdiv(B_r, max_tile), 2 if B_r >= 2 * align else 1)
    TB = _round_up(_cdiv(B_r, steps), align)
    steps = _cdiv(B_r, TB)
    return TB, TB * steps


# --------------------------------------------------------------------------- #
# Kernels
# --------------------------------------------------------------------------- #
def _mlp_kernel(obs_ref, w1_ref, b1_ref, w2_ref, b2_ref, w3_ref, b3_ref, out_ref):
    """Linear -> LeakyReLU -> Linear -> LeakyReLU -> Linear on one batch tile.

    Output block: (TB, out_pad) lane-dense, compute dtype."""
    x = obs_ref[...].astype(w1_ref.dtype)          # cast inside kernel (no HBM pass)
    h = jnp.dot(x, w1_ref[...], preferred_element_type=jnp.float32) + b1_ref[...]
    h = _leaky_relu(h).astype(w2_ref.dtype)
    h = jnp.dot(h, w2_ref[...], preferred_element_type=jnp.float32) + b2_ref[...]
    h = _leaky_relu(h).astype(w3_ref.dtype)
    o = jnp.dot(h, w3_ref[...], preferred_element_type=jnp.float32) + b3_ref[...]
    out_ref[...] = o.astype(out_ref.dtype)


def _mlp_kernel_t(obs_ref, w1_ref, b1_ref, w2_ref, b2_ref, w3t_ref, b3t_ref, out_ref):
    """Same MLP, but the (tiny) fused last layer is applied transposed so the
    output block is (A_sub, TB): batch on lanes, only A_sub sublanes written."""
    x = obs_ref[...].astype(w1_ref.dtype)
    h = jnp.dot(x, w1_ref[...], preferred_element_type=jnp.float32) + b1_ref[...]
    h = _leaky_relu(h).astype(w2_ref.dtype)
    h = jnp.dot(h, w2_ref[...], preferred_element_type=jnp.float32) + b2_ref[...]
    h = _leaky_relu(h).astype(w3t_ref.dtype)
    # o^T[a, b] = sum_h w3t[a, h] * h[b, h]   (NT matmul, no explicit transpose)
    o_t = jnp.einsum('ah,bh->ab', w3t_ref[...], h,
                     preferred_element_type=jnp.float32)
    out_ref[...] = (o_t + b3t_ref[...]).astype(out_ref.dtype)


# --------------------------------------------------------------------------- #
# Module
# --------------------------------------------------------------------------- #
def _init_linear(key, fan_in, fan_out):
    """Deterministic init mimicking torch.nn.Linear default (uniform +-1/sqrt(fan_in))."""
    kw, kb = jax.random.split(key)
    bound = 1.0 / math.sqrt(fan_in)
    w = jax.random.uniform(kw, (fan_in, fan_out), jnp.float32, -bound, bound)
    b = jax.random.uniform(kb, (1, fan_out), jnp.float32, -bound, bound)
    return w, b


class MultiHeadQNetPallas:
    """Pallas implementation of MultiHeadQNet (hidden_layers fixed to 2)."""

    def __init__(self, obs_dim, action_dim, hidden_size, n_head, key,
                 compute_dtype=jnp.float32,   # jnp.bfloat16 recommended on v6e/v7x
                 max_batch_tile=1024,         # amortizes ~0.35us per grid step
                 pallas_min_batch=256):       # below this, plain XLA fusion is faster
        self.n_head = n_head
        self.action_dim = action_dim
        self.obs_dim = obs_dim
        self.hidden = hidden_size
        self.compute_dtype = compute_dtype
        self.max_batch_tile = int(max_batch_tile)
        self.pallas_min_batch = pallas_min_batch

        out_dim = n_head * action_dim
        self._out_dim = out_dim
        self._out_pad = _round_up(out_dim, LANE)        # lane-dense full output
        self._act_sub = _round_up(action_dim, SUBLANE)  # sublane-padded fused output
        self._hidden_pad = _round_up(hidden_size, LANE)

        k1, k2, k3 = jax.random.split(key, 3)
        self.w1, self.b1 = _init_linear(k1, obs_dim, hidden_size)
        self.w2, self.b2 = _init_linear(k2, hidden_size, hidden_size)
        self.w3, self.b3 = _init_linear(k3, hidden_size, out_dim)

        cd = compute_dtype
        H, Hp = hidden_size, self._hidden_pad
        # Lane-pad the hidden dim (exact: LeakyReLU(0)=0, zero rows/cols are inert).
        self._kw1 = jnp.pad(self.w1, ((0, 0), (0, Hp - H))).astype(cd)
        self._kb1 = jnp.pad(self.b1, ((0, 0), (0, Hp - H)))               # f32
        self._kw2 = jnp.pad(self.w2, ((0, Hp - H), (0, Hp - H))).astype(cd)
        self._kb2 = jnp.pad(self.b2, ((0, 0), (0, Hp - H)))
        # forward(): lane-padded full n_head*action_dim output.
        pad3 = self._out_pad - out_dim
        self._kw3 = jnp.pad(self.w3, ((0, Hp - H), (0, pad3))).astype(cd)
        self._kb3 = jnp.pad(self.b3, ((0, 0), (0, pad3)))
        # q_value(): head-mean fused into the last layer (exact), transposed layout.
        mean_mix = jnp.full((n_head, 1), 1.0 / n_head, jnp.float32)
        self._kw3t_mean, self._kb3t_mean = self._mix_last_layer_t(mean_mix)

    # ------------------------------------------------------------------ #
    def _mix_last_layer_t(self, m):
        """Fuse a convex head mix m (n_head, 1) into W3/b3; transposed, padded."""
        H, K, A = self.hidden, self.n_head, self.action_dim
        Hp, A_sub = self._hidden_pad, self._act_sub
        w3_mix = jnp.einsum('hka,k->ha', self.w3.reshape(H, K, A), m[:, 0])
        b3_mix = jnp.einsum('ka,k->a', self.b3.reshape(K, A), m[:, 0])
        w3t = jnp.pad(w3_mix.T, ((0, A_sub - A), (0, Hp - H))).astype(self.compute_dtype)
        b3t = jnp.pad(b3_mix.reshape(A, 1), ((0, A_sub - A), (0, 0)))     # f32
        return w3t, b3t

    # ------------------------------------------------------------------ #
    def _pallas_mlp(self, obs, w3, b3, *, transposed):
        """Run the 3-layer MLP kernel on the batch.

        transposed=False: returns (Bp, out_pad) in compute dtype.
        transposed=True:  returns (A_sub, Bp)   in compute dtype (out^T)."""
        B = obs.shape[0]
        obs_dim = self.obs_dim
        Hp = self._hidden_pad
        cd = self.compute_dtype
        itemsize = jnp.dtype(cd).itemsize

        align = LANE if transposed else SUBLANE   # transposed: batch is the lane dim
        TB, Bp = _tile_batch(B, align, self.max_batch_tile)
        if Bp != B:
            obs = jnp.pad(obs, ((0, Bp - B), (0, 0)))
        steps = Bp // TB

        if transposed:
            A_sub = w3.shape[0]                              # w3 is (A_sub, Hp)
            n_out = A_sub
            out_shape = jax.ShapeDtypeStruct((A_sub, Bp), cd)
            out_spec = pl.BlockSpec((A_sub, TB), lambda i: (0, i))
            out_elems = A_sub * Bp
            kernel = _mlp_kernel_t
        else:
            n_out = w3.shape[1]                              # w3 is (Hp, out_pad)
            out_shape = jax.ShapeDtypeStruct((Bp, n_out), cd)
            out_spec = pl.BlockSpec((TB, n_out), lambda i: (i, 0))
            out_elems = Bp * n_out
            kernel = _mlp_kernel

        const2 = lambda i: (0, 0)
        weight_elems = obs_dim * Hp + Hp * Hp + Hp * n_out
        flops = 2 * Bp * (obs_dim * Hp + Hp * Hp + Hp * n_out)
        bytes_accessed = (obs.dtype.itemsize * Bp * obs_dim     # obs read
                          + itemsize * out_elems                # output write
                          + itemsize * weight_elems             # weights
                          + 4 * (2 * Hp + n_out))               # f32 biases

        return pl.pallas_call(
            kernel,
            out_shape=out_shape,
            grid=(steps,),
            in_specs=[
                pl.BlockSpec((TB, obs_dim), lambda i: (i, 0)),   # obs: tiled over batch
                pl.BlockSpec(self._kw1.shape, const2),           # weights: VMEM-resident
                pl.BlockSpec(self._kb1.shape, const2),
                pl.BlockSpec(self._kw2.shape, const2),
                pl.BlockSpec(self._kb2.shape, const2),
                pl.BlockSpec(w3.shape, const2),
                pl.BlockSpec(b3.shape, const2),
            ],
            out_specs=out_spec,
            compiler_params=pltpu.CompilerParams(
                dimension_semantics=("parallel",),   # megacore sharding on v7x
                vmem_limit_bytes=32 * 1024 * 1024,   # tiny usage; raise only if hidden/TB grow
            ),
            cost_estimate=pl.CostEstimate(
                flops=flops, transcendentals=0, bytes_accessed=bytes_accessed),
        )(obs, self._kw1, self._kb1, self._kw2, self._kb2, w3, b3)

    def _mlp_ref(self, obs):
        """Plain-JAX (f32) path for tiny batches and correctness checks."""
        h = _leaky_relu(obs @ self.w1 + self.b1)
        h = _leaky_relu(h @ self.w2 + self.b2)
        return h @ self.w3 + self.b3

    # ------------------------------------------------------------------ #
    def forward(self, obs, force_pallas=False):
        B = obs.shape[0]
        if force_pallas or B >= self.pallas_min_batch:
            flat = self._pallas_mlp(obs, self._kw3, self._kb3, transposed=False)
            flat = flat[:B, :self._out_dim].astype(jnp.float32)
        else:
            flat = self._mlp_ref(obs)
        # .view(-1, n_head, action_dim)
        return flat.reshape(-1, self.n_head, self.action_dim)

    def q_value(self, obs, force_pallas=False):
        # combine_function(..., 'mean'), fused into the last layer (exact).
        B = obs.shape[0]
        if force_pallas or B >= self.pallas_min_batch:
            out_t = self._pallas_mlp(obs, self._kw3t_mean, self._kb3t_mean,
                                     transposed=True)
            return out_t[:self.action_dim, :B].T.astype(jnp.float32)
        return jnp.mean(self.forward(obs), axis=1)

    def q_convex(self, obs, key, force_pallas=False):
        # combine_function(..., 'random'): random L1-normalized convex mix over
        # heads, fused into the last layer (exact, since the mix is linear).
        # Uses an explicit JAX PRNG key instead of torch's global RNG state.
        B = obs.shape[0]
        m = jax.random.uniform(key, (self.n_head, 1), jnp.float32)
        m = m / jnp.sum(jnp.abs(m), axis=0, keepdims=True)
        if force_pallas or B >= self.pallas_min_batch:
            w3t, b3t = self._mix_last_layer_t(m)
            out_t = self._pallas_mlp(obs, w3t, b3t, transposed=True)
            q = out_t[:self.action_dim, :B].T.astype(jnp.float32)
            return q.reshape(B, 1, self.action_dim)      # matches einsum 'bka,kc->bca'
        raw = self.forward(obs)
        return jnp.einsum('bka,kc->bca', raw, m)


if __name__ == "__main__":
    # Small shapes consistent with the module: obs (B, obs_dim) flat features.
    B, OBS_DIM, ACTION_DIM, HIDDEN, N_HEAD = 2, 16, 4, 32, 5

    key = jax.random.PRNGKey(0)
    k_params, k_obs, k_mix = jax.random.split(key, 3)

    net = MultiHeadQNetPallas(OBS_DIM, ACTION_DIM, HIDDEN, N_HEAD, k_params)
    obs = jax.random.normal(k_obs, (B, OBS_DIM), jnp.float32)

    # Force the Pallas path even at tiny B so all kernels are exercised.
    out = jax.block_until_ready(net.forward(obs, force_pallas=True))
    assert out.shape == (B, N_HEAD, ACTION_DIM), out.shape

    # Pure-JAX reference check of the kernel (f32 path is tight).
    ref = net._mlp_ref(obs).reshape(-1, N_HEAD, ACTION_DIM)
    assert jnp.allclose(out, ref, atol=1e-5, rtol=1e-5)

    # Fused head-mean q_value (transposed-output kernel).
    qv = jax.block_until_ready(net.q_value(obs, force_pallas=True))
    assert qv.shape == (B, ACTION_DIM)
    assert jnp.allclose(qv, jnp.mean(ref, axis=1), atol=1e-5, rtol=1e-5)

    # Fused random-convex q_convex (transposed-output kernel).
    qc = jax.block_until_ready(net.q_convex(obs, k_mix, force_pallas=True))
    assert qc.shape == (B, 1, ACTION_DIM)
    m = jax.random.uniform(k_mix, (N_HEAD, 1), jnp.float32)
    m = m / jnp.sum(jnp.abs(m), axis=0, keepdims=True)
    qc_ref = jnp.einsum('bka,kc->bca', ref, m)
    assert jnp.allclose(qc, qc_ref, atol=1e-5, rtol=1e-5)

    # bf16 compute path (recommended on v6e/v7x): loose-tolerance smoke test.
    net_bf16 = MultiHeadQNetPallas(OBS_DIM, ACTION_DIM, HIDDEN, N_HEAD, k_params,
                                   compute_dtype=jnp.bfloat16)
    out_bf16 = jax.block_until_ready(net_bf16.forward(obs, force_pallas=True))
    assert out_bf16.shape == (B, N_HEAD, ACTION_DIM)
    assert bool(jnp.all(jnp.isfinite(out_bf16)))
    assert jnp.allclose(out_bf16, ref, atol=1e-1, rtol=1e-1)

    print("KERNEL_OK")
</pallas_src>

<mosaic_0001>
module attributes {stable_mosaic.version = 11 : i64} {
  func.func @_mlp_kernel(%arg0: i32, %arg1: memref<8x16xf32, #tpu.memory_space<vmem>>, %arg2: memref<16x128xf32, #tpu.memory_space<vmem>>, %arg3: memref<1x128xf32, #tpu.memory_space<vmem>>, %arg4: memref<128x128xf32, #tpu.memory_space<vmem>>, %arg5: memref<1x128xf32, #tpu.memory_space<vmem>>, %arg6: memref<128x128xf32, #tpu.memory_space<vmem>>, %arg7: memref<1x128xf32, #tpu.memory_space<vmem>>, %arg8: memref<8x128xf32, #tpu.memory_space<vmem>>) attributes {dimension_semantics = [#tpu.dimension_semantics<parallel>], iteration_bounds = array<i64: 1>, scalar_prefetch = 0 : i64, scratch_operands = 0 : i64, tpu.core_type = #tpu.core_type<tc>, window_params = [{transform_indices = @transform_0, window_bounds = array<i64: 8, 16>}, {pipeline_mode = #tpu.pipeline_mode<synchronous>, transform_indices = @transform_1, window_bounds = array<i64: 16, 128>}, {pipeline_mode = #tpu.pipeline_mode<synchronous>, transform_indices = @transform_2, window_bounds = array<i64: 1, 128>}, {pipeline_mode = #tpu.pipeline_mode<synchronous>, transform_indices = @transform_3, window_bounds = array<i64: 128, 128>}, {pipeline_mode = #tpu.pipeline_mode<synchronous>, transform_indices = @transform_4, window_bounds = array<i64: 1, 128>}, {pipeline_mode = #tpu.pipeline_mode<synchronous>, transform_indices = @transform_5, window_bounds = array<i64: 128, 128>}, {pipeline_mode = #tpu.pipeline_mode<synchronous>, transform_indices = @transform_6, window_bounds = array<i64: 1, 128>}, {transform_indices = @transform_7, window_bounds = array<i64: 8, 128>}]} {
    %c0 = arith.constant 0 : index
    %c0_0 = arith.constant 0 : index
    %0 = vector.load %arg1[%c0, %c0_0] : memref<8x16xf32, #tpu.memory_space<vmem>>, vector<8x16xf32>
    %c0_1 = arith.constant 0 : index
    %c0_2 = arith.constant 0 : index
    %1 = vector.load %arg2[%c0_1, %c0_2] : memref<16x128xf32, #tpu.memory_space<vmem>>, vector<16x128xf32>
    %cst = arith.constant dense<0.000000e+00> : vector<8x128xf32>
    %2 = tpu.matmul %0, %1, %cst {dimension_numbers = #tpu.dot_dimension_numbers<[1], [0], [0], [1], [0, 0, 1, 1], [], []>} : vector<8x16xf32>, vector<16x128xf32>, vector<8x128xf32> -> vector<8x128xf32>
    %c0_3 = arith.constant 0 : index
    %c0_4 = arith.constant 0 : index
    %3 = vector.load %arg3[%c0_3, %c0_4] : memref<1x128xf32, #tpu.memory_space<vmem>>, vector<1x128xf32>
    %4 = vector.broadcast %3 : vector<1x128xf32> to vector<8x128xf32>
    %5 = arith.addf %2, %4 : vector<8x128xf32>
    %cst_5 = arith.constant 0.00999999977 : f32
    %6 = vector.broadcast %cst_5 : f32 to vector<8x128xf32>
    %7 = arith.mulf %6, %5 : vector<8x128xf32>
    %8 = arith.maximumf %5, %7 : vector<8x128xf32>
    %c0_6 = arith.constant 0 : index
    %c0_7 = arith.constant 0 : index
    %9 = vector.load %arg4[%c0_6, %c0_7] : memref<128x128xf32, #tpu.memory_space<vmem>>, vector<128x128xf32>
    %cst_8 = arith.constant dense<0.000000e+00> : vector<8x128xf32>
    %10 = tpu.matmul %8, %9, %cst_8 {dimension_numbers = #tpu.dot_dimension_numbers<[1], [0], [0], [1], [0, 0, 1, 1], [], []>} : vector<8x128xf32>, vector<128x128xf32>, vector<8x128xf32> -> vector<8x128xf32>
    %c0_9 = arith.constant 0 : index
    %c0_10 = arith.constant 0 : index
    %11 = vector.load %arg5[%c0_9, %c0_10] : memref<1x128xf32, #tpu.memory_space<vmem>>, vector<1x128xf32>
    %12 = vector.broadcast %11 : vector<1x128xf32> to vector<8x128xf32>
    %13 = arith.addf %10, %12 : vector<8x128xf32>
    %cst_11 = arith.constant 0.00999999977 : f32
    %14 = vector.broadcast %cst_11 : f32 to vector<8x128xf32>
    %15 = arith.mulf %14, %13 : vector<8x128xf32>
    %16 = arith.maximumf %13, %15 : vector<8x128xf32>
    %c0_12 = arith.constant 0 : index
    %c0_13 = arith.constant 0 : index
    %17 = vector.load %arg6[%c0_12, %c0_13] : memref<128x128xf32, #tpu.memory_space<vmem>>, vector<128x128xf32>
    %cst_14 = arith.constant dense<0.000000e+00> : vector<8x128xf32>
    %18 = tpu.matmul %16, %17, %cst_14 {dimension_numbers = #tpu.dot_dimension_numbers<[1], [0], [0], [1], [0, 0, 1, 1], [], []>} : vector<8x128xf32>, vector<128x128xf32>, vector<8x128xf32> -> vector<8x128xf32>
    %c0_15 = arith.constant 0 : index
    %c0_16 = arith.constant 0 : index
    %19 = vector.load %arg7[%c0_15, %c0_16] : memref<1x128xf32, #tpu.memory_space<vmem>>, vector<1x128xf32>
    %20 = vector.broadcast %19 : vector<1x128xf32> to vector<8x128xf32>
    %21 = arith.addf %18, %20 : vector<8x128xf32>
    %c0_17 = arith.constant 0 : index
    %c0_18 = arith.constant 0 : index
    %22 = vector.load %arg8[%c0_17, %c0_18] : memref<8x128xf32, #tpu.memory_space<vmem>>, vector<8x128xf32>
    tpu.vector_store %arg8[%c0_17, %c0_18], %21 {strides = array<i32>} : memref<8x128xf32, #tpu.memory_space<vmem>>, vector<8x128xf32>,
    return
  }
  func.func @transform_0(%arg0: i32) -> (i32, i32) {
    %c0_i32 = arith.constant 0 : i32
    %c0_i32_0 = arith.constant 0 : i32
    return %arg0, %c0_i32 : i32, i32
  }
  func.func @transform_1(%arg0: i32) -> (i32, i32) {
    %c0_i32 = arith.constant 0 : i32
    %c0_i32_0 = arith.constant 0 : i32
    %c0_i32_1 = arith.constant 0 : i32
    return %c0_i32, %c0_i32_0 : i32, i32
  }
  func.func @transform_2(%arg0: i32) -> (i32, i32) {
    %c0_i32 = arith.constant 0 : i32
    %c0_i32_0 = arith.constant 0 : i32
    %c0_i32_1 = arith.constant 0 : i32
    return %c0_i32, %c0_i32_0 : i32, i32
  }
  func.func @transform_3(%arg0: i32) -> (i32, i32) {
    %c0_i32 = arith.constant 0 : i32
    %c0_i32_0 = arith.constant 0 : i32
    %c0_i32_1 = arith.constant 0 : i32
    return %c0_i32, %c0_i32_0 : i32, i32
  }
  func.func @transform_4(%arg0: i32) -> (i32, i32) {
    %c0_i32 = arith.constant 0 : i32
    %c0_i32_0 = arith.constant 0 : i32
    %c0_i32_1 = arith.constant 0 : i32
    return %c0_i32, %c0_i32_0 : i32, i32
  }
  func.func @transform_5(%arg0: i32) -> (i32, i32) {
    %c0_i32 = arith.constant 0 : i32
    %c0_i32_0 = arith.constant 0 : i32
    %c0_i32_1 = arith.constant 0 : i32
    return %c0_i32, %c0_i32_0 : i32, i32
  }
  func.func @transform_6(%arg0: i32) -> (i32, i32) {
    %c0_i32 = arith.constant 0 : i32
    %c0_i32_0 = arith.constant 0 : i32
    %c0_i32_1 = arith.constant 0 : i32
    return %c0_i32, %c0_i32_0 : i32, i32
  }
  func.func @transform_7(%arg0: i32) -> (i32, i32) {
    %c0_i32 = arith.constant 0 : i32
    %c0_i32_0 = arith.constant 0 : i32
    return %arg0, %c0_i32 : i32, i32
  }
}

</mosaic_0001>

<llo_original>
// kernel: tpu_custom_call.1
$region0: #{tpu_custom_call.1}
  #allocation0 [shape = 'u32[]', space=smem, size = 0x4, offset = 0x4, fixed_abs, tag = 'smem constant byte address 0x4 - core index']
  #allocation1 [shape = 'u32[144,128]{1,0:T(1,128)}', space=vmem, size = 0x12000, scoped, tag = 'internal scratch']
  %s0 = inlined_call_operand.hbm [shape: f32[8,16], index: 0, kind: input, shape index: {}]
  %s1 = inlined_call_operand.hbm [shape: f32[16,128], index: 1, kind: input, shape index: {}]
  %s2 = inlined_call_operand.vmem [shape: f32[1,128], index: 2, kind: input, shape index: {}]
  %s3 = inlined_call_operand.hbm [shape: f32[128,128], index: 3, kind: input, shape index: {}]
  %s4 = inlined_call_operand.vmem [shape: f32[1,128], index: 4, kind: input, shape index: {}]
  %s5 = inlined_call_operand.hbm [shape: f32[128,128], index: 5, kind: input, shape index: {}]
  %s6 = inlined_call_operand.vmem [shape: f32[1,128], index: 6, kind: input, shape index: {}]
  %s7 = inlined_call_operand.hbm [shape: f32[8,128], index: 7, kind: output, shape index: {}]
  %s8 = sld [smem:[#allocation0]]
  $region54: #{tpu_custom_call.1} parent=0
    _
  %s10 = ssub.s32 1, %s8
  %s11 = scalar_select 0, %s10, %s8
  $region1: #{tpu_custom_call.1} parent=0
    #allocation2 [shape = 'u8[4096]{0}', space=vmem, size = 0x1000, scoped, tag = 'input window, operand 0, single buffered']
    #allocation3 [shape = 's32[1]{0}', space=sflag, size = 0x4, scoped, tag = 'scoped memory for tpu_custom_call.1']
    #allocation4 [shape = 's32[1]{0}', space=sflag, size = 0x4, scoped, tag = 'scoped memory for tpu_custom_call.1']
    #allocation5 [shape = 'u8[8192]{0}', space=vmem, size = 0x2000, scoped, tag = 'input window, operand 1, single buffered']
    #allocation6 [shape = 's32[1]{0}', space=sflag, size = 0x4, scoped, tag = 'scoped memory for tpu_custom_call.1']
    #allocation7 [shape = 'u8[65536]{0}', space=vmem, size = 0x10000, scoped, tag = 'input window, operand 3, single buffered']
    #allocation8 [shape = 'u8[65536]{0}', space=vmem, size = 0x10000, scoped, tag = 'input window, operand 5, single buffered']
    #allocation9 [shape = 's32[1]{0}', space=sflag, size = 0x4, scoped, tag = 'scoped memory for tpu_custom_call.1']
    #allocation10 [shape = 'u8[4096]{0}', space=vmem, size = 0x1000, scoped, tag = 'output window, operand 0, single buffered']
    %12 = vsyncpa [#allocation3], 0
    %13 = vsyncpa [#allocation6], 0
    %14 = vsyncpa [#allocation9], 0
    %15 = vsyncpa [#allocation4], 0
    // Predicated region
    $region2: #{tpu_custom_call.1} parent=1 // pred_check
      _
    $region3: #{tpu_custom_call.1} parent=1 // pred_check_branch
      %17 = sbr.rel (0) target = $region5
    $region4: #{tpu_custom_call.1} parent=1 // pred_region
      %s19 = ssub.s32 128, 128
      %20 = vsyncadd [#allocation3], %s19
      %s22 = sshll.u32 [#allocation2], 4
      %s23 = int_to_ptr.vmem [resolvable:$true] %s22
      %25 = dma.hbm_to_vmem [thread:$0]  %s0, 128, %s23, [#allocation3]
    $region5: #{tpu_custom_call.1} parent=1 // pred_fallthru
      _
    // Predicated region
    $region6: #{tpu_custom_call.1} parent=1 // pred_check
      _
    $region7: #{tpu_custom_call.1} parent=1 // pred_check_branch
      %27 = sbr.rel (0) target = $region9
    $region8: #{tpu_custom_call.1} parent=1 // pred_region
      %s29 = ssub.s32 256, 256
      %30 = vsyncadd [#allocation6], %s29
      %s31 = sshll.u32 [#allocation5], 4
      %s32 = int_to_ptr.vmem [resolvable:$true] %s31
      %37 = dma.hbm_to_vmem [thread:$0]  %s1, 256, %s32, [#allocation6], 128, 128, 8
    $region9: #{tpu_custom_call.1} parent=1 // pred_fallthru
      _
    // Predicated region
    $region10: #{tpu_custom_call.1} parent=1 // pred_check
      _
    $region11: #{tpu_custom_call.1} parent=1 // pred_check_branch
      %39 = sbr.rel (0) target = $region13
    $region12: #{tpu_custom_call.1} parent=1 // pred_region
      _
    $region13: #{tpu_custom_call.1} parent=1 // pred_fallthru
      _
    // Predicated region
    $region14: #{tpu_custom_call.1} parent=1 // pred_check
      _
    $region15: #{tpu_custom_call.1} parent=1 // pred_check_branch
      %41 = sbr.rel (0) target = $region17
    $region16: #{tpu_custom_call.1} parent=1 // pred_region
      %s43 = ssub.s32 2048, 2048
      %44 = vsyncadd [#allocation6], %s43
      %s45 = sshll.u32 [#allocation7], 4
      %s46 = int_to_ptr.vmem [resolvable:$true] %s45
      %51 = dma.hbm_to_vmem [thread:$0]  %s3, 2048, %s46, [#allocation6], 128, 128, 8
    $region17: #{tpu_custom_call.1} parent=1 // pred_fallthru
      _
    // Predicated region
    $region18: #{tpu_custom_call.1} parent=1 // pred_check
      _
    $region19: #{tpu_custom_call.1} parent=1 // pred_check_branch
      %53 = sbr.rel (0) target = $region21
    $region20: #{tpu_custom_call.1} parent=1 // pred_region
      _
    $region21: #{tpu_custom_call.1} parent=1 // pred_fallthru
      _
    // Predicated region
    $region22: #{tpu_custom_call.1} parent=1 // pred_check
      _
    $region23: #{tpu_custom_call.1} parent=1 // pred_check_branch
      %55 = sbr.rel (0) target = $region25
    $region24: #{tpu_custom_call.1} parent=1 // pred_region
      %s57 = ssub.s32 2048, 2048
      %58 = vsyncadd [#allocation9], %s57
      %s59 = sshll.u32 [#allocation8], 4
      %s60 = int_to_ptr.vmem [resolvable:$true] %s59
      %65 = dma.hbm_to_vmem [thread:$0]  %s5, 2048, %s60, [#allocation9], 128, 128, 8
    $region25: #{tpu_custom_call.1} parent=1 // pred_fallthru
      _
    // Predicated region
    $region26: #{tpu_custom_call.1} parent=1 // pred_check
      _
    $region27: #{tpu_custom_call.1} parent=1 // pred_check_branch
      %67 = sbr.rel (0) target = $region29
    $region28: #{tpu_custom_call.1} parent=1 // pred_region
      _
    $region29: #{tpu_custom_call.1} parent=1 // pred_fallthru
      _
    // Predicated region
    $region30: #{tpu_custom_call.1} parent=1 // pred_check
      _
    $region31: #{tpu_custom_call.1} parent=1 // pred_check_branch
      %69 = sbr.rel (0) target = $region33
    $region32: #{tpu_custom_call.1} parent=1 // pred_region
      %70 = dma.done [#allocation3], 128
    $region33: #{tpu_custom_call.1} parent=1 // pred_fallthru
      _
    // Predicated region
    $region34: #{tpu_custom_call.1} parent=1 // pred_check
      _
    $region35: #{tpu_custom_call.1} parent=1 // pred_check_branch
      %72 = sbr.rel (0) target = $region37
    $region36: #{tpu_custom_call.1} parent=1 // pred_region
      %73 = dma.done [#allocation6], 256
    $region37: #{tpu_custom_call.1} parent=1 // pred_fallthru
      _
    // Predicated region
    $region38: #{tpu_custom_call.1} parent=1 // pred_check
      _
    $region39: #{tpu_custom_call.1} parent=1 // pred_check_branch
      %75 = sbr.rel (0) target = $region41
    $region40: #{tpu_custom_call.1} parent=1 // pred_region
      %76 = dma.done [#allocation6], 2048
    $region41: #{tpu_custom_call.1} parent=1 // pred_fallthru
      _
    // Predicated region
    $region42: #{tpu_custom_call.1} parent=1 // pred_check
      _
    $region43: #{tpu_custom_call.1} parent=1 // pred_check_branch
      %78 = sbr.rel (0) target = $region45
    $region44: #{tpu_custom_call.1} parent=1 // pred_region
      %79 = dma.done [#allocation9], 2048
    $region45: #{tpu_custom_call.1} parent=1 // pred_fallthru
      _
    %v80 = vld [vmem:[#allocation2] sm:$0xff]
    %v81 = vld [vmem:[#allocation5] sm:$0xff]
    %v82 = vld [vmem:[#allocation5 + $0x8] sm:$0xff]
    %v83 = vld [vmem:[%s2] sm:$0x1]
    %v85 = vlaneseq
    %v86 = vshrl.u32 %v85, 7
    %v87 = vsub.s32 0, %v86
    %v88 = vrot.slane %v83, %v87
    %vm90 = vcmask 130048
    %v92 = vsel %vm90, %v80, 0
    %94 = vmatprep.subr.mxu0 0.0
    %95 = vmatpush1.msra.mxu0 0.0
    %96 = vmatprep.subr.mxu0 0.0
    %97 = vmatpush1.msra.mxu0 0.0
    %98 = vmatprep.subr.mxu0 0.0
    %99 = vmatpush1.msra.mxu0 0.0
    %100 = vmatprep.subr.mxu0 0.0
    %101 = vmatpush1.msra.mxu0 0.0
    %102 = vmatprep.subr.mxu0 0.0
    %103 = vmatpush1.msra.mxu0 0.0
    %104 = vmatprep.subr.mxu0 0.0
    %105 = vmatpush1.msra.mxu0 0.0
    %106 = vmatprep.subr.mxu0 0.0
    %107 = vmatpush1.msra.mxu0 0.0
    %108 = vmatprep.subr.mxu0 0.0
    %109 = vmatpush1.msra.mxu0 0.0
    %110 = vmatprep.subr.mxu0 0.0
    %111 = vmatpush1.msra.mxu0 0.0
    %112 = vmatprep.subr.mxu0 0.0
    %113 = vmatpush1.msra.mxu0 0.0
    %114 = vmatprep.subr.mxu0 0.0
    %115 = vmatpush1.msra.mxu0 0.0
    %116 = vmatprep.subr.mxu0 0.0
    %117 = vmatpush1.msra.mxu0 0.0
    %118 = vmatprep.subr.mxu0 0.0
    %119 = vmatpush1.msra.mxu0 0.0
    %120 = vmatprep.subr.mxu0 0.0
    %121 = vmatpush1.msra.mxu0 0.0
    %122 = vmatprep.subr.mxu0 0.0
    %123 = vmatpush1.msra.mxu0 %v82
    %124 = vmatprep.subr.mxu0 0.0
    %125 = vmatpush1.msra.mxu0 %v81
    %126 = vmatprep.subr.mxu0 0.0
    %127 = vmatpush2.msra.mxu0 0.0
    %128 = vmatprep.subr.mxu0 0.0
    %129 = vmatpush2.msra.mxu0 0.0
    %130 = vmatprep.subr.mxu0 0.0
    %131 = vmatpush2.msra.mxu0 0.0
    %132 = vmatprep.subr.mxu0 0.0
    %133 = vmatpush2.msra.mxu0 0.0
    %134 = vmatprep.subr.mxu0 0.0
    %135 = vmatpush2.msra.mxu0 0.0
    %136 = vmatprep.subr.mxu0 0.0
    %137 = vmatpush2.msra.mxu0 0.0
    %138 = vmatprep.subr.mxu0 0.0
    %139 = vmatpush2.msra.mxu0 0.0
    %140 = vmatprep.subr.mxu0 0.0
    %141 = vmatpush2.msra.mxu0 0.0
    %142 = vmatprep.subr.mxu0 0.0
    %143 = vmatpush2.msra.mxu0 0.0
    %144 = vmatprep.subr.mxu0 0.0
    %145 = vmatpush2.msra.mxu0 0.0
    %146 = vmatprep.subr.mxu0 0.0
    %147 = vmatpush2.msra.mxu0 0.0
    %148 = vmatprep.subr.mxu0 0.0
    %149 = vmatpush2.msra.mxu0 0.0
    %150 = vmatprep.subr.mxu0 0.0
    %151 = vmatpush2.msra.mxu0 0.0
    %152 = vmatprep.subr.mxu0 0.0
    %153 = vmatpush2.msra.mxu0 0.0
    %154 = vmatprep.subr.mxu0 0.0
    %155 = vmatpush2.msra.mxu0 0.0
    %156 = vmatprep.subr.mxu0 0.0
    %157 = vmatpush2.msra.mxu0 0.0
    %158 = vmatprep.mubr.f32.mxu0 0.0
    %159 = vmatmul.mubr.f32.gmra.mxu0 %v92
    %v160 = vpop.f32.mrf.mxu0
    %v161 = vadd.f32 %v88, %v160
    %v162 = vpop.f32.mrf.mxu0
    %163 = vdwg.mxu0
    %v164 = vmul.f32 %v161, 0.01
    %v165 = vmax.f32 %v161, %v164
    %v166 = vld [vmem:[#allocation7] sm:$0xff]
    %v167 = vld [vmem:[#allocation7 + $0x8] sm:$0xff]
    %v168 = vld [vmem:[#allocation7 + $0x10] sm:$0xff]
    %v169 = vld [vmem:[#allocation7 + $0x18] sm:$0xff]
    %v170 = vld [vmem:[#allocation7 + $0x20] sm:$0xff]
    %v171 = vld [vmem:[#allocation7 + $0x28] sm:$0xff]
    %v172 = vld [vmem:[#allocation7 + $0x30] sm:$0xff]
    %v173 = vld [vmem:[#allocation7 + $0x38] sm:$0xff]
    %v174 = vld [vmem:[#allocation7 + $0x40] sm:$0xff]
    %v175 = vld [vmem:[#allocation7 + $0x48] sm:$0xff]
    %v176 = vld [vmem:[#allocation7 + $0x50] sm:$0xff]
    %v177 = vld [vmem:[#allocation7 + $0x58] sm:$0xff]
    %v178 = vld [vmem:[#allocation7 + $0x60] sm:$0xff]
    %v179 = vld [vmem:[#allocation7 + $0x68] sm:$0xff]
    %v180 = vld [vmem:[#allocation7 + $0x70] sm:$0xff]
    %v181 = vld [vmem:[#allocation7 + $0x78] sm:$0xff]
    %v182 = vld [vmem:[%s4] sm:$0x1]
    %v184 = vlaneseq
    %v185 = vshrl.u32 %v184, 7
    %v186 = vsub.s32 0, %v185
    %v187 = vrot.slane %v182, %v186
    %189 = vmatprep.subr.mxu0 0.0
    %190 = vmatpush1.msra.mxu0 %v181
    %191 = vmatprep.subr.mxu0 0.0
    %192 = vmatpush1.msra.mxu0 %v180
    %193 = vmatprep.subr.mxu0 0.0
    %194 = vmatpush1.msra.mxu0 %v179
    %195 = vmatprep.subr.mxu0 0.0
    %196 = vmatpush1.msra.mxu0 %v178
    %197 = vmatprep.subr.mxu0 0.0
    %198 = vmatpush1.msra.mxu0 %v177
    %199 = vmatprep.subr.mxu0 0.0
    %200 = vmatpush1.msra.mxu0 %v176
    %201 = vmatprep.subr.mxu0 0.0
    %202 = vmatpush1.msra.mxu0 %v175
    %203 = vmatprep.subr.mxu0 0.0
    %204 = vmatpush1.msra.mxu0 %v174
    %205 = vmatprep.subr.mxu0 0.0
    %206 = vmatpush1.msra.mxu0 %v173
    %207 = vmatprep.subr.mxu0 0.0
    %208 = vmatpush1.msra.mxu0 %v172
    %209 = vmatprep.subr.mxu0 0.0
    %210 = vmatpush1.msra.mxu0 %v171
    %211 = vmatprep.subr.mxu0 0.0
    %212 = vmatpush1.msra.mxu0 %v170
    %213 = vmatprep.subr.mxu0 0.0
    %214 = vmatpush1.msra.mxu0 %v169
    %215 = vmatprep.subr.mxu0 0.0
    %216 = vmatpush1.msra.mxu0 %v168
    %217 = vmatprep.subr.mxu0 0.0
    %218 = vmatpush1.msra.mxu0 %v167
    %219 = vmatprep.subr.mxu0 0.0
    %220 = vmatpush1.msra.mxu0 %v166
    %221 = vmatprep.subr.mxu0 0.0
    %222 = vmatpush2.msra.mxu0 0.0
    %223 = vmatprep.subr.mxu0 0.0
    %224 = vmatpush2.msra.mxu0 0.0
    %225 = vmatprep.subr.mxu0 0.0
    %226 = vmatpush2.msra.mxu0 0.0
    %227 = vmatprep.subr.mxu0 0.0
    %228 = vmatpush2.msra.mxu0 0.0
    %229 = vmatprep.subr.mxu0 0.0
    %230 = vmatpush2.msra.mxu0 0.0
    %231 = vmatprep.subr.mxu0 0.0
    %232 = vmatpush2.msra.mxu0 0.0
    %233 = vmatprep.subr.mxu0 0.0
    %234 = vmatpush2.msra.mxu0 0.0
    %235 = vmatprep.subr.mxu0 0.0
    %236 = vmatpush2.msra.mxu0 0.0
    %237 = vmatprep.subr.mxu0 0.0
    %238 = vmatpush2.msra.mxu0 0.0
    %239 = vmatprep.subr.mxu0 0.0
    %240 = vmatpush2.msra.mxu0 0.0
    %241 = vmatprep.subr.mxu0 0.0
    %242 = vmatpush2.msra.mxu0 0.0
    %243 = vmatprep.subr.mxu0 0.0
    %244 = vmatpush2.msra.mxu0 0.0
    %245 = vmatprep.subr.mxu0 0.0
    %246 = vmatpush2.msra.mxu0 0.0
    %247 = vmatprep.subr.mxu0 0.0
    %248 = vmatpush2.msra.mxu0 0.0
    %249 = vmatprep.subr.mxu0 0.0
    %250 = vmatpush2.msra.mxu0 0.0
    %251 = vmatprep.subr.mxu0 0.0
    %252 = vmatpush2.msra.mxu0 0.0
    %253 = vmatprep.mubr.f32.mxu0 0.0
    %254 = vmatmul.mubr.f32.gmra.mxu0 %v165
    %v255 = vpop.f32.mrf.mxu0
    %v256 = vadd.f32 %v187, %v255
    %v257 = vpop.f32.mrf.mxu0
    %258 = vdwg.mxu0
    %v259 = vmul.f32 %v256, 0.01
    %v260 = vmax.f32 %v256, %v259
    %v261 = vld [vmem:[#allocation8] sm:$0xff]
    %v262 = vld [vmem:[#allocation8 + $0x8] sm:$0xff]
    %v263 = vld [vmem:[#allocation8 + $0x10] sm:$0xff]
    %v264 = vld [vmem:[#allocation8 + $0x18] sm:$0xff]
    %v265 = vld [vmem:[#allocation8 + $0x20] sm:$0xff]
    %v266 = vld [vmem:[#allocation8 + $0x28] sm:$0xff]
    %v267 = vld [vmem:[#allocation8 + $0x30] sm:$0xff]
    %v268 = vld [vmem:[#allocation8 + $0x38] sm:$0xff]
    %v269 = vld [vmem:[#allocation8 + $0x40] sm:$0xff]
    %v270 = vld [vmem:[#allocation8 + $0x48] sm:$0xff]
    %v271 = vld [vmem:[#allocation8 + $0x50] sm:$0xff]
    %v272 = vld [vmem:[#allocation8 + $0x58] sm:$0xff]
    %v273 = vld [vmem:[#allocation8 + $0x60] sm:$0xff]
    %v274 = vld [vmem:[#allocation8 + $0x68] sm:$0xff]
    %v275 = vld [vmem:[#allocation8 + $0x70] sm:$0xff]
    %v276 = vld [vmem:[#allocation8 + $0x78] sm:$0xff]
    %v277 = vld [vmem:[%s6] sm:$0x1]
    %v279 = vlaneseq
    %v280 = vshrl.u32 %v279, 7
    %v281 = vsub.s32 0, %v280
    %v282 = vrot.slane %v277, %v281
    %284 = vmatprep.subr.mxu0 0.0
    %285 = vmatpush1.msra.mxu0 %v276
    %286 = vmatprep.subr.mxu0 0.0
    %287 = vmatpush1.msra.mxu0 %v275
    %288 = vmatprep.subr.mxu0 0.0
    %289 = vmatpush1.msra.mxu0 %v274
    %290 = vmatprep.subr.mxu0 0.0
    %291 = vmatpush1.msra.mxu0 %v273
    %292 = vmatprep.subr.mxu0 0.0
    %293 = vmatpush1.msra.mxu0 %v272
    %294 = vmatprep.subr.mxu0 0.0
    %295 = vmatpush1.msra.mxu0 %v271
    %296 = vmatprep.subr.mxu0 0.0
    %297 = vmatpush1.msra.mxu0 %v270
    %298 = vmatprep.subr.mxu0 0.0
    %299 = vmatpush1.msra.mxu0 %v269
    %300 = vmatprep.subr.mxu0 0.0
    %301 = vmatpush1.msra.mxu0 %v268
    %302 = vmatprep.subr.mxu0 0.0
    %303 = vmatpush1.msra.mxu0 %v267
    %304 = vmatprep.subr.mxu0 0.0
    %305 = vmatpush1.msra.mxu0 %v266
    %306 = vmatprep.subr.mxu0 0.0
    %307 = vmatpush1.msra.mxu0 %v265
    %308 = vmatprep.subr.mxu0 0.0
    %309 = vmatpush1.msra.mxu0 %v264
    %310 = vmatprep.subr.mxu0 0.0
    %311 = vmatpush1.msra.mxu0 %v263
    %312 = vmatprep.subr.mxu0 0.0
    %313 = vmatpush1.msra.mxu0 %v262
    %314 = vmatprep.subr.mxu0 0.0
    %315 = vmatpush1.msra.mxu0 %v261
    %316 = vmatprep.subr.mxu0 0.0
    %317 = vmatpush2.msra.mxu0 0.0
    %318 = vmatprep.subr.mxu0 0.0
    %319 = vmatpush2.msra.mxu0 0.0
    %320 = vmatprep.subr.mxu0 0.0
    %321 = vmatpush2.msra.mxu0 0.0
    %322 = vmatprep.subr.mxu0 0.0
    %323 = vmatpush2.msra.mxu0 0.0
    %324 = vmatprep.subr.mxu0 0.0
    %325 = vmatpush2.msra.mxu0 0.0
    %326 = vmatprep.subr.mxu0 0.0
    %327 = vmatpush2.msra.mxu0 0.0
    %328 = vmatprep.subr.mxu0 0.0
    %329 = vmatpush2.msra.mxu0 0.0
    %330 = vmatprep.subr.mxu0 0.0
    %331 = vmatpush2.msra.mxu0 0.0
    %332 = vmatprep.subr.mxu0 0.0
    %333 = vmatpush2.msra.mxu0 0.0
    %334 = vmatprep.subr.mxu0 0.0
    %335 = vmatpush2.msra.mxu0 0.0
    %336 = vmatprep.subr.mxu0 0.0
    %337 = vmatpush2.msra.mxu0 0.0
    %338 = vmatprep.subr.mxu0 0.0
    %339 = vmatpush2.msra.mxu0 0.0
    %340 = vmatprep.subr.mxu0 0.0
    %341 = vmatpush2.msra.mxu0 0.0
    %342 = vmatprep.subr.mxu0 0.0
    %343 = vmatpush2.msra.mxu0 0.0
    %344 = vmatprep.subr.mxu0 0.0
    %345 = vmatpush2.msra.mxu0 0.0
    %346 = vmatprep.subr.mxu0 0.0
    %347 = vmatpush2.msra.mxu0 0.0
    %348 = vmatprep.mubr.f32.mxu0 0.0
    %349 = vmatmul.mubr.f32.gmra.mxu0 %v260
    %v350 = vpop.f32.mrf.mxu0
    %v351 = vadd.f32 %v282, %v350
    %v352 = vpop.f32.mrf.mxu0
    %353 = vdwg.mxu0
    %354 = vst [vmem:[#allocation10] sm:$0xff] %v351
    // Predicated region
    $region46: #{tpu_custom_call.1} parent=1 // pred_check
      _
    $region47: #{tpu_custom_call.1} parent=1 // pred_check_branch
      %356 = sbr.rel (0) target = $region49
    $region48: #{tpu_custom_call.1} parent=1 // pred_region
      %s358 = ssub.s32 128, 128
      %359 = vsyncadd [#allocation4], %s358
      %s361 = sshll.u32 [#allocation10], 4
      %s362 = int_to_ptr.vmem [resolvable:$true] %s361
      %364 = dma.vmem_to_hbm [thread:$0]  %s362, 128, %s7, [#allocation4]
    $region49: #{tpu_custom_call.1} parent=1 // pred_fallthru
      _
    // Predicated region
    $region50: #{tpu_custom_call.1} parent=1 // pred_check
      _
    $region51: #{tpu_custom_call.1} parent=1 // pred_check_branch
      %366 = sbr.rel (0) target = $region53
    $region52: #{tpu_custom_call.1} parent=1 // pred_region
      %367 = dma.done [#allocation4], 128
    $region53: #{tpu_custom_call.1} parent=1 // pred_fallthru
      _
    %368 = vsyncpa [#allocation3], 1
    %369 = vsyncpa [#allocation6], 1
    %370 = vsyncpa [#allocation9], 1
    %371 = vsyncpa [#allocation4], 1

</llo_original>
